<compile_context>
chip_gen: v7x
topology: tpu7x:2x2x1
jax: 0.10.0
libtpu: 0.0.40
codegen_flags: <defaults>
</compile_context>

<pallas_src>
import functools

import jax
import jax.numpy as jnp
from jax import lax
from jax.experimental import pallas as pl
from jax.experimental.pallas import tpu as pltpu


_LANE = 128
# v7x has 64 MiB VMEM per TensorCore (v5e/v6e: 128 MiB). Budget tiles against
# the smallest generation and raise the scoped limit explicitly.
_VMEM_LIMIT_BYTES = 48 * 1024 * 1024
_VMEM_TILE_BUDGET = 40 * 1024 * 1024


def _round_up(n, m):
    return ((n + m - 1) // m) * m


def _gate_from_pools(avg, mx, w1, w2):
    """sigmoid(fc(avg) + fc(mx)) with the two FC branches fused into one dot."""
    bt = avg.shape[0]
    v = jnp.concatenate([avg, mx], axis=0)                    # (2*bt, C) f32
    w1f = w1.astype(jnp.float32)
    w2f = w2.astype(jnp.float32)
    h = jnp.maximum(jnp.dot(v, w1f, preferred_element_type=jnp.float32), 0.0)
    y = jnp.dot(h, w2f, preferred_element_type=jnp.float32)   # (2*bt, C)
    return jax.nn.sigmoid(y[:bt] + y[bt:])                    # (bt, C) f32


# ----------------------------------------------------------------------------
# Path A: resident (C, L) slab per batch tile — 1R + 1W of x.
# ----------------------------------------------------------------------------
def _ca_fused_kernel(x_ref, w1_ref, w2_ref, o_ref, *, l_true):
    x = x_ref[...]                                   # (bt, C, Lp), input dtype
    lp = x.shape[-1]

    # Pool over L. The wrapper zero-pads L, so the sum is exact as-is; the max
    # needs the padded columns masked out. Sum accumulates in f32.
    s = jnp.sum(x, axis=-1, dtype=jnp.float32)       # (bt, C)
    if lp != l_true:
        col = lax.broadcasted_iota(jnp.int32, x.shape, 2)
        mx_in = jnp.where(col < l_true, x, jnp.array(-jnp.inf, dtype=x.dtype))
    else:
        mx_in = x
    mx = jnp.max(mx_in, axis=-1).astype(jnp.float32)  # (bt, C)
    avg = s * (1.0 / float(l_true))

    gate = _gate_from_pools(avg, mx, w1_ref[...], w2_ref[...])  # (bt, C) f32
    # Apply in the input dtype: keeps the hot elementwise path bf16-wide on
    # v6e/v7x and the store lane-dense.
    o_ref[...] = x * gate.astype(x.dtype)[:, :, None]


def _ca_fused_call(x, w1, w2, *, batch_tile, l_true):
    B, C, Lp = x.shape
    kernel = functools.partial(_ca_fused_kernel, l_true=l_true)
    return pl.pallas_call(
        kernel,
        out_shape=jax.ShapeDtypeStruct((B, C, Lp), x.dtype),
        grid_spec=pltpu.PrefetchScalarGridSpec(
            num_scalar_prefetch=0,
            grid=(pl.cdiv(B, batch_tile),),
            in_specs=[
                pl.BlockSpec((batch_tile, C, Lp), lambda b: (b, 0, 0)),
                pl.BlockSpec(w1.shape, lambda b: (0, 0)),
                pl.BlockSpec(w2.shape, lambda b: (0, 0)),
            ],
            out_specs=pl.BlockSpec((batch_tile, C, Lp), lambda b: (b, 0, 0)),
        ),
        compiler_params=pltpu.CompilerParams(
            dimension_semantics=("parallel",),        # shard batch over v7x's 2 TCs
            vmem_limit_bytes=_VMEM_LIMIT_BYTES,
        ),
    )(x, w1, w2)


# ----------------------------------------------------------------------------
# Path B: two-pass (tiled-L gate reduction, then tiled elementwise apply).
# ----------------------------------------------------------------------------
def _ca_gate_kernel(x_ref, w1_ref, w2_ref, g_ref, sum_acc, max_acc,
                    *, l_true, l_tile, needs_mask):
    li = pl.program_id(1)

    @pl.when(li == 0)
    def _():
        sum_acc[...] = jnp.zeros_like(sum_acc)
        max_acc[...] = jnp.full_like(max_acc, -jnp.inf)

    x = x_ref[...]                                   # (bt, C, Lt), input dtype
    if needs_mask:
        col = li * l_tile + lax.broadcasted_iota(jnp.int32, x.shape, 2)
        mx_in = jnp.where(col < l_true, x, jnp.array(-jnp.inf, dtype=x.dtype))
    else:
        mx_in = x
    # Wrapper zero-pads L, so the running sum needs no masking.
    sum_acc[...] += jnp.sum(x, axis=-1, dtype=jnp.float32)
    max_acc[...] = jnp.maximum(max_acc[...],
                               jnp.max(mx_in, axis=-1).astype(jnp.float32))

    @pl.when(li == pl.num_programs(1) - 1)
    def _():
        avg = sum_acc[...] * (1.0 / float(l_true))
        gate = _gate_from_pools(avg, max_acc[...], w1_ref[...], w2_ref[...])
        g_ref[...] = gate[:, :, None]                # (bt, C, 1) f32


def _ca_gate_call(x, w1, w2, *, batch_tile, l_tile, l_true):
    B, C, Lp = x.shape
    kernel = functools.partial(_ca_gate_kernel, l_true=l_true, l_tile=l_tile,
                               needs_mask=(Lp != l_true))
    return pl.pallas_call(
        kernel,
        out_shape=jax.ShapeDtypeStruct((B, C, 1), jnp.float32),
        grid_spec=pltpu.PrefetchScalarGridSpec(
            num_scalar_prefetch=0,
            grid=(pl.cdiv(B, batch_tile), Lp // l_tile),   # reduction axis last
            in_specs=[
                pl.BlockSpec((batch_tile, C, l_tile), lambda b, l: (b, 0, l)),
                pl.BlockSpec(w1.shape, lambda b, l: (0, 0)),
                pl.BlockSpec(w2.shape, lambda b, l: (0, 0)),
            ],
            out_specs=pl.BlockSpec((batch_tile, C, 1), lambda b, l: (b, 0, 0)),
            scratch_shapes=[
                pltpu.VMEM((batch_tile, C), jnp.float32),   # running sum
                pltpu.VMEM((batch_tile, C), jnp.float32),   # running max
            ],
        ),
        compiler_params=pltpu.CompilerParams(
            dimension_semantics=("parallel", "arbitrary"),
            vmem_limit_bytes=_VMEM_LIMIT_BYTES,
        ),
    )(x, w1, w2)


def _ca_apply_kernel(x_ref, g_ref, o_ref):
    x = x_ref[...]                                   # (bt, C, Lt)
    o_ref[...] = x * g_ref[...].astype(x.dtype)      # g: (bt, C, 1), broadcast


def _ca_apply_call(x, gate, *, batch_tile, l_tile):
    B, C, Lp = x.shape
    return pl.pallas_call(
        _ca_apply_kernel,
        out_shape=jax.ShapeDtypeStruct((B, C, Lp), x.dtype),
        grid_spec=pltpu.PrefetchScalarGridSpec(
            num_scalar_prefetch=0,
            grid=(pl.cdiv(B, batch_tile), Lp // l_tile),
            in_specs=[
                pl.BlockSpec((batch_tile, C, l_tile), lambda b, l: (b, 0, l)),
                pl.BlockSpec((batch_tile, C, 1), lambda b, l: (b, 0, 0)),
            ],
            out_specs=pl.BlockSpec((batch_tile, C, l_tile), lambda b, l: (b, 0, l)),
        ),
        compiler_params=pltpu.CompilerParams(
            dimension_semantics=("parallel", "parallel"),
            vmem_limit_bytes=_VMEM_LIMIT_BYTES,
        ),
    )(x, gate)


# ----------------------------------------------------------------------------
# Public wrapper.
# ----------------------------------------------------------------------------
def ca_layer(x, w1, w2, *, l_tile=512, force_two_pass=False):
    """x: (B, C, L); w1: (C, H); w2: (H, C). Returns (B, C, L).

    Note: if the caller does not need x afterwards, input_output_aliases={0: 0}
    could be added to reuse x's HBM buffer; left off to keep the call
    non-destructive.
    """
    B, C, L = x.shape
    itemsize = jnp.dtype(x.dtype).itemsize

    # --- Path A: whole (C, L) slab resident per batch tile (1R + 1W of x).
    lp_a = _round_up(L, _LANE)                       # lane-dense stores
    slab_bytes = 4 * C * lp_a * itemsize             # 2x in + 2x out (dbl-buffered)
    if not force_two_pass and slab_bytes <= _VMEM_TILE_BUDGET:
        bt = max(1, min(B, _VMEM_TILE_BUDGET // slab_bytes))
        # Keep >=~4 grid steps when B allows: pipelining depth + v7x megacore.
        bt = max(1, min(bt, -(-B // 4)))
        xp = x if lp_a == L else jnp.pad(x, ((0, 0), (0, 0), (0, lp_a - L)))
        out = _ca_fused_call(xp, w1, w2, batch_tile=bt, l_true=L)
        return out if lp_a == L else out[..., :L]

    # --- Path B: two-pass (gate reduction then elementwise apply), 2R + 1W.
    lt = max(_LANE, _round_up(min(l_tile, L), _LANE))
    lp_b = _round_up(L, lt)
    bt = max(1, min(B, _VMEM_TILE_BUDGET // (4 * C * lt * itemsize)))
    bt = max(1, min(bt, -(-B // 2)))                 # >=2 batch steps for v7x
    xp = x if lp_b == L else jnp.pad(x, ((0, 0), (0, 0), (0, lp_b - L)))
    gate = _ca_gate_call(xp, w1, w2, batch_tile=bt, l_tile=lt, l_true=L)
    out = _ca_apply_call(xp, gate, batch_tile=bt, l_tile=lt)
    return out if lp_b == L else out[..., :L]


def ca_layer_ref(x, w1, w2):
    """Pure-JAX reference matching the PyTorch forward."""
    avg = jnp.mean(x, axis=-1)
    mx = jnp.max(x, axis=-1)

    def fc(v):
        return jnp.maximum(v @ w1, 0.0) @ w2

    gate = jax.nn.sigmoid(fc(avg) + fc(mx))
    return x * gate[:, :, None]


if __name__ == "__main__":
    # Small shapes consistent with the module: channel=16, hidden=32 (fixed by
    # the module), batch=2.
    B, C, H = 2, 16, 32
    key = jax.random.PRNGKey(0)
    kx1, kx2, k1, k2 = jax.random.split(key, 4)

    # PyTorch Linear weight is (out, in); we pass the transposed (in, out) form.
    w1 = jax.random.normal(k1, (C, H), dtype=jnp.float32) * (1.0 / jnp.sqrt(C))
    w2 = jax.random.normal(k2, (H, C), dtype=jnp.float32) * (1.0 / jnp.sqrt(H))

    # Case 1: lane-aligned L -> resident-slab path (and forced two-pass path).
    x1 = jax.random.normal(kx1, (B, C, 512), dtype=jnp.float32)
    ref1 = ca_layer_ref(x1, w1, w2)
    out1 = jax.block_until_ready(ca_layer(x1, w1, w2))
    assert out1.shape == x1.shape
    assert jnp.allclose(out1, ref1, atol=1e-5, rtol=1e-5)
    out1b = jax.block_until_ready(
        ca_layer(x1, w1, w2, l_tile=128, force_two_pass=True))
    assert jnp.allclose(out1b, ref1, atol=1e-5, rtol=1e-5)

    # Case 2: L not a multiple of 128 -> wrapper padding + in-kernel max mask.
    x2 = jax.random.normal(kx2, (B, C, 200), dtype=jnp.float32)
    ref2 = ca_layer_ref(x2, w1, w2)
    out2 = jax.block_until_ready(ca_layer(x2, w1, w2))
    assert jnp.allclose(out2, ref2, atol=1e-5, rtol=1e-5)
    out2b = jax.block_until_ready(
        ca_layer(x2, w1, w2, l_tile=128, force_two_pass=True))
    assert jnp.allclose(out2b, ref2, atol=1e-5, rtol=1e-5)

    # Case 3: bf16 activations stay bf16 on the load/store + apply path.
    xb = x1.astype(jnp.bfloat16)
    refb = ca_layer_ref(xb.astype(jnp.float32), w1, w2)
    outb = jax.block_until_ready(ca_layer(xb, w1, w2))
    assert outb.dtype == jnp.bfloat16
    assert jnp.allclose(outb.astype(jnp.float32), refb, atol=5e-2, rtol=5e-2)

    print("KERNEL_OK")
</pallas_src>

<mosaic_0001>
module attributes {stable_mosaic.version = 11 : i64} {
  func.func @_ca_fused_kernel(%arg0: i32, %arg1: memref<1x16x512xf32, #tpu.memory_space<vmem>>, %arg2: memref<16x32xf32, #tpu.memory_space<vmem>>, %arg3: memref<32x16xf32, #tpu.memory_space<vmem>>, %arg4: memref<1x16x512xf32, #tpu.memory_space<vmem>>) attributes {dimension_semantics = [#tpu.dimension_semantics<parallel>], iteration_bounds = array<i64: 2>, scalar_prefetch = 0 : i64, scratch_operands = 0 : i64, tpu.core_type = #tpu.core_type<tc>, window_params = [{transform_indices = @transform_0, window_bounds = array<i64: 1, 16, 512>}, {pipeline_mode = #tpu.pipeline_mode<synchronous>, transform_indices = @transform_1, window_bounds = array<i64: 16, 32>}, {pipeline_mode = #tpu.pipeline_mode<synchronous>, transform_indices = @transform_2, window_bounds = array<i64: 32, 16>}, {transform_indices = @transform_3, window_bounds = array<i64: 1, 16, 512>}]} {
    %c0 = arith.constant 0 : index
    %c0_0 = arith.constant 0 : index
    %c0_1 = arith.constant 0 : index
    %0 = vector.load %arg1[%c0, %c0_0, %c0_1] : memref<1x16x512xf32, #tpu.memory_space<vmem>>, vector<1x16x512xf32>
    %cst = arith.constant dense<0.000000e+00> : vector<1x16xf32>
    %1 = vector.multi_reduction <add>, %0, %cst [2] : vector<1x16x512xf32> to vector<1x16xf32>
    %cst_2 = arith.constant dense<0xFF800000> : vector<1x16xf32>
    %2 = vector.multi_reduction <maximumf>, %0, %cst_2 [2] : vector<1x16x512xf32> to vector<1x16xf32>
    %cst_3 = arith.constant 0.001953125 : f32
    %3 = vector.broadcast %cst_3 : f32 to vector<1x16xf32>
    %4 = arith.mulf %1, %3 : vector<1x16xf32>
    %c0_4 = arith.constant 0 : index
    %c0_5 = arith.constant 0 : index
    %5 = vector.load %arg2[%c0_4, %c0_5] : memref<16x32xf32, #tpu.memory_space<vmem>>, vector<16x32xf32>
    %c0_6 = arith.constant 0 : index
    %c0_7 = arith.constant 0 : index
    %6 = vector.load %arg3[%c0_6, %c0_7] : memref<32x16xf32, #tpu.memory_space<vmem>>, vector<32x16xf32>
    %7 = tpu.concatenate %4, %2 in 0 : vector<1x16xf32>, vector<1x16xf32> -> vector<2x16xf32>
    %cst_8 = arith.constant dense<0.000000e+00> : vector<2x32xf32>
    %8 = tpu.matmul %7, %5, %cst_8 {dimension_numbers = #tpu.dot_dimension_numbers<[1], [0], [0], [1], [0, 0, 1, 1], [], []>} : vector<2x16xf32>, vector<16x32xf32>, vector<2x32xf32> -> vector<2x32xf32>
    %cst_9 = arith.constant 0.000000e+00 : f32
    %9 = vector.broadcast %cst_9 : f32 to vector<2x32xf32>
    %10 = arith.maximumf %8, %9 : vector<2x32xf32>
    %cst_10 = arith.constant dense<0.000000e+00> : vector<2x16xf32>
    %11 = tpu.matmul %10, %6, %cst_10 {dimension_numbers = #tpu.dot_dimension_numbers<[1], [0], [0], [1], [0, 0, 1, 1], [], []>} : vector<2x32xf32>, vector<32x16xf32>, vector<2x16xf32> -> vector<2x16xf32>
    %12 = vector.extract_strided_slice %11 {offsets = [0, 0], sizes = [1, 16], strides = [1, 1]} : vector<2x16xf32> to vector<1x16xf32>
    %13 = vector.extract_strided_slice %11 {offsets = [1, 0], sizes = [1, 16], strides = [1, 1]} : vector<2x16xf32> to vector<1x16xf32>
    %14 = arith.addf %12, %13 : vector<1x16xf32>
    %15 = arith.negf %14 : vector<1x16xf32>
    %16 = math.exp %15 : vector<1x16xf32>
    %cst_11 = arith.constant 1.000000e+00 : f32
    %17 = vector.broadcast %cst_11 : f32 to vector<1x16xf32>
    %18 = arith.addf %17, %16 : vector<1x16xf32>
    %19 = arith.divf %17, %18 : vector<1x16xf32>
    %20 = vector.shape_cast %19 : vector<1x16xf32> to vector<1x16x1xf32>
    %21 = vector.broadcast %20 : vector<1x16x1xf32> to vector<1x16x512xf32>
    %22 = arith.mulf %0, %21 : vector<1x16x512xf32>
    %c0_12 = arith.constant 0 : index
    %c0_13 = arith.constant 0 : index
    %c0_14 = arith.constant 0 : index
    %23 = vector.load %arg4[%c0_12, %c0_13, %c0_14] : memref<1x16x512xf32, #tpu.memory_space<vmem>>, vector<1x16x512xf32>
    tpu.vector_store %arg4[%c0_12, %c0_13, %c0_14], %22 {strides = array<i32>} : memref<1x16x512xf32, #tpu.memory_space<vmem>>, vector<1x16x512xf32>,
    return
  }
  func.func @transform_0(%arg0: i32) -> (i32, i32, i32) {
    %c0_i32 = arith.constant 0 : i32
    %c0_i32_0 = arith.constant 0 : i32
    %c0_i32_1 = arith.constant 0 : i32
    return %arg0, %c0_i32, %c0_i32_0 : i32, i32, i32
  }
  func.func @transform_1(%arg0: i32) -> (i32, i32) {
    %c0_i32 = arith.constant 0 : i32
    %c0_i32_0 = arith.constant 0 : i32
    %c0_i32_1 = arith.constant 0 : i32
    return %c0_i32, %c0_i32_0 : i32, i32
  }
  func.func @transform_2(%arg0: i32) -> (i32, i32) {
    %c0_i32 = arith.constant 0 : i32
    %c0_i32_0 = arith.constant 0 : i32
    %c0_i32_1 = arith.constant 0 : i32
    return %c0_i32, %c0_i32_0 : i32, i32
  }
  func.func @transform_3(%arg0: i32) -> (i32, i32, i32) {
    %c0_i32 = arith.constant 0 : i32
    %c0_i32_0 = arith.constant 0 : i32
    %c0_i32_1 = arith.constant 0 : i32
    return %arg0, %c0_i32, %c0_i32_0 : i32, i32, i32
  }
}

</mosaic_0001>

<llo_original>
// kernel: tpu_custom_call.1
$region0: #{tpu_custom_call.1}
  #allocation0 [shape = 'u32[]', space=smem, size = 0x4, offset = 0x4, fixed_abs, tag = 'smem constant byte address 0x4 - core index']
  #allocation1 [shape = 'u32[144,128]{1,0:T(1,128)}', space=vmem, size = 0x12000, scoped, tag = 'internal scratch']
  %s0 = inlined_call_operand.hbm [shape: f32[2,16,512], index: 0, kind: input, shape index: {}]
  %s1 = inlined_call_operand.vmem [shape: f32[16,32], index: 1, kind: input, shape index: {}]
  %s2 = inlined_call_operand.vmem [shape: f32[32,16], index: 2, kind: input, shape index: {}]
  %s3 = inlined_call_operand.hbm [shape: f32[2,16,512], index: 3, kind: output, shape index: {}]
  %s4 = sld [smem:[#allocation0]]
  $region49: #{tpu_custom_call.1} parent=0
    _
  %s6 = ssub.s32 1, %s4
  %s7 = scalar_select 0, %s6, %s4
  $region1: #{tpu_custom_call.1} parent=0
    #allocation2 [shape = 'u8[65536]{0}', space=vmem, size = 0x10000, scoped, tag = 'input window, operand 0']
    #allocation3 [shape = 's32[2]{0}', space=sflag, size = 0x8, scoped, tag = 'scoped memory for tpu_custom_call.1']
    #allocation4 [shape = 's32[2]{0}', space=sflag, size = 0x8, scoped, tag = 'scoped memory for tpu_custom_call.1']
    #allocation5 [shape = 'u8[65536]{0}', space=vmem, size = 0x10000, scoped, tag = 'output window, operand 0']
    %8 = vsyncpa [#allocation3], 0
    %s9 = scalar_lea.sflag [#allocation3], 1
    %10 = vsyncpa %s9, 0
    %11 = vsyncpa [#allocation4], 0
    %s12 = scalar_lea.sflag [#allocation4], 1
    %13 = vsyncpa %s12, 0
    loop: start=0, step=1, limit=4
    $region2: #{tpu_custom_call.1} parent=1 // loop_pre_header
      _
    $region3: #{tpu_custom_call.1} parent=1 // loop_header
      %s15 = sphi 0, %s19
      %p16 = scmp.ge.s32.totalorder %s15, 4
      %s25 = sphi 0, %s27
      %s28 = sphi 0, %s25
      %s29 = sphi 0, %s28
      %s45 = sphi 0, %s29
      %s49 = sphi 0, %s49
      %s51 = sphi 0, %s49
      %s52 = sphi 0, %s51
      %s66 = sphi 0, %s52
      %s70 = sphi 0, %s70
      %s72 = sphi 0, %s70
      %s73 = sphi 0, %s72
      %s87 = sphi 0, %s73
      %s93 = sphi 0, %s95
      %s96 = sphi 0, %s93
      %s97 = sphi 0, %s96
      %s113 = sphi 0, %s97
    $region4: #{tpu_custom_call.1} parent=1 // loop_header_branch
      %18 = sbr.rel (%p16) target = $region8
    $region5: #{tpu_custom_call.1} parent=1 // loop_body
      %s20 = ssub.s32 %s15, 1
      %s21 = ssub.s32 %s15, 2
      %s22 = sadd.s32 %s15, 1
      %s23 = ssub.s32 %s15, %s22
      %p24 = scmp.eq.s32.totalorder %s23, 0
      %s26 = sadd.s32 %s25, 1
      %s27 = scalar_select %p24, %s25, %s26
      %p30 = pneg %p24
      %p31 = scmp.eq.s32.totalorder %s15, 1
      %p32 = por %p30, %p31
      %p33 = scmp.ne.s32.totalorder %s25, %s28
      %p34 = scmp.eq.s32.totalorder %s15, 0
      %p35 = por %p33, %p34
      %p36 = scmp.ne.s32.totalorder %s25, %s28
      %p37 = scmp.eq.s32.totalorder %s20, 1
      %p38 = por %p36, %p37
      %p39 = scmp.ne.s32.totalorder %s28, %s29
      %p40 = scmp.eq.s32.totalorder %s20, 0
      %p41 = por %p39, %p40
      %p42 = scmp.ne.s32.totalorder %s28, %s29
      %p43 = scmp.eq.s32.totalorder %s21, 1
      %p44 = por %p42, %p43
      %p46 = scmp.ne.s32.totalorder %s29, %s45
      %p47 = scmp.eq.s32.totalorder %s21, 0
      %p48 = por %p46, %p47
      %s50 = sadd.s32 %s49, 1
      %p53 = scmp.eq.s32.totalorder %s15, 1
      %p54 = scmp.ne.s32.totalorder %s49, %s51
      %p55 = scmp.eq.s32.totalorder %s15, 0
      %p56 = por %p54, %p55
      %p57 = scmp.ne.s32.totalorder %s49, %s51
      %p58 = scmp.eq.s32.totalorder %s20, 1
      %p59 = por %p57, %p58
      %p60 = scmp.ne.s32.totalorder %s51, %s52
      %p61 = scmp.eq.s32.totalorder %s20, 0
      %p62 = por %p60, %p61
      %p63 = scmp.ne.s32.totalorder %s51, %s52
      %p64 = scmp.eq.s32.totalorder %s21, 1
      %p65 = por %p63, %p64
      %p67 = scmp.ne.s32.totalorder %s52, %s66
      %p68 = scmp.eq.s32.totalorder %s21, 0
      %p69 = por %p67, %p68
      %s71 = sadd.s32 %s70, 1
      %p74 = scmp.eq.s32.totalorder %s15, 1
      %p75 = scmp.ne.s32.totalorder %s70, %s72
      %p76 = scmp.eq.s32.totalorder %s15, 0
      %p77 = por %p75, %p76
      %p78 = scmp.ne.s32.totalorder %s70, %s72
      %p79 = scmp.eq.s32.totalorder %s20, 1
      %p80 = por %p78, %p79
      %p81 = scmp.ne.s32.totalorder %s72, %s73
      %p82 = scmp.eq.s32.totalorder %s20, 0
      %p83 = por %p81, %p82
      %p84 = scmp.ne.s32.totalorder %s72, %s73
      %p85 = scmp.eq.s32.totalorder %s21, 1
      %p86 = por %p84, %p85
      %p88 = scmp.ne.s32.totalorder %s73, %s87
      %p89 = scmp.eq.s32.totalorder %s21, 0
      %p90 = por %p88, %p89
      %s91 = ssub.s32 %s15, %s22
      %p92 = scmp.eq.s32.totalorder %s91, 0
      %s94 = sadd.s32 %s93, 1
      %s95 = scalar_select %p92, %s93, %s94
      %p98 = pneg %p92
      %p99 = scmp.eq.s32.totalorder %s15, 1
      %p100 = por %p98, %p99
      %p101 = scmp.ne.s32.totalorder %s93, %s96
      %p102 = scmp.eq.s32.totalorder %s15, 0
      %p103 = por %p101, %p102
      %p104 = scmp.ne.s32.totalorder %s93, %s96
      %p105 = scmp.eq.s32.totalorder %s20, 1
      %p106 = por %p104, %p105
      %p107 = scmp.ne.s32.totalorder %s96, %s97
      %p108 = scmp.eq.s32.totalorder %s20, 0
      %p109 = por %p107, %p108
      %p110 = scmp.ne.s32.totalorder %s96, %s97
      %p111 = scmp.eq.s32.totalorder %s21, 1
      %p112 = por %p110, %p111
      %p114 = scmp.ne.s32.totalorder %s97, %s113
      %p115 = scmp.eq.s32.totalorder %s21, 0
      %p116 = por %p114, %p115
      %p117 = scmp.le.s32.totalorder 1, %s15
      %p118 = scmp.lt.s32.totalorder %s15, 3
      %p119 = pnand %p117, %p118
      %p120 = pneg %p119
      // Predicated region
      $region9: #{tpu_custom_call.1} parent=5 // pred_check
        _
      $region10: #{tpu_custom_call.1} parent=5 // pred_check_branch
        %122 = sbr.rel (%p119) target = $region12
      $region11: #{tpu_custom_call.1} parent=5 // pred_region
        %s123 = ssub.s32 %s15, 1
        // Predicated region
        $region13: #{tpu_custom_call.1} parent=11 // pred_check
          %p124 = pneg %p62
        $region14: #{tpu_custom_call.1} parent=11 // pred_check_branch
          %126 = sbr.rel (%p124) target = $region16
        $region15: #{tpu_custom_call.1} parent=11 // pred_region
          _
        $region16: #{tpu_custom_call.1} parent=11 // pred_fallthru
          _
        // Predicated region
        $region17: #{tpu_custom_call.1} parent=11 // pred_check
          %p127 = pneg %p83
        $region18: #{tpu_custom_call.1} parent=11 // pred_check_branch
          %129 = sbr.rel (%p127) target = $region20
        $region19: #{tpu_custom_call.1} parent=11 // pred_region
          _
        $region20: #{tpu_custom_call.1} parent=11 // pred_fallthru
          _
      $region12: #{tpu_custom_call.1} parent=5 // pred_fallthru
        _
      %p130 = scmp.lt.s32.totalorder %s15, 2
      // Predicated region
      $region21: #{tpu_custom_call.1} parent=5 // pred_check
        %p131 = pneg %p130
      $region22: #{tpu_custom_call.1} parent=5 // pred_check_branch
        %133 = sbr.rel (%p131) target = $region24
      $region23: #{tpu_custom_call.1} parent=5 // pred_region
        // Predicated region
        $region25: #{tpu_custom_call.1} parent=23 // pred_check
          %p134 = pneg %p35
        $region26: #{tpu_custom_call.1} parent=23 // pred_check_branch
          %136 = sbr.rel (%p134) target = $region28
        $region27: #{tpu_custom_call.1} parent=23 // pred_region
          %s137 = sand.u32 %s25, 1
          %s138 = scalar_lea.sflag [#allocation3], %s137
          %s139 = sand.u32 %s25, 1
          %s140 = smul.addr %s139, 64
          %s141 = scalar_lea.vmem [#allocation2], %s140
          %s143 = ssub.s32 1024, 1024
          %144 = vsyncadd %s138, %s143
          %s145 = smul.addr %s15, 8
          %s146 = smul.addr %s145, 128
          %s147 = scalar_lea.hbm %s0, %s146
          %s148 = sshll.u32 %s141, 4
          %s149 = int_to_ptr.vmem [resolvable:$true] %s148
          %154 = dma.hbm_to_vmem [thread:$0]  %s147, 1024, %s149, %s138, 512, 512, 32
        $region28: #{tpu_custom_call.1} parent=23 // pred_fallthru
          _
      $region24: #{tpu_custom_call.1} parent=5 // pred_fallthru
        _
      %p155 = scmp.le.s32.totalorder 1, %s15
      %p156 = scmp.lt.s32.totalorder %s15, 3
      %p157 = pnand %p155, %p156
      %p158 = pneg %p157
      // Predicated region
      $region29: #{tpu_custom_call.1} parent=5 // pred_check
        _
      $region30: #{tpu_custom_call.1} parent=5 // pred_check_branch
        %160 = sbr.rel (%p157) target = $region32
      $region31: #{tpu_custom_call.1} parent=5 // pred_region
        %s161 = ssub.s32 %s15, 1
        %s162 = sand.u32 %s28, 1
        %s163 = scalar_lea.sflag [#allocation3], %s162
        %s164 = sand.u32 %s28, 1
        %s165 = smul.addr %s164, 64
        %s166 = scalar_lea.vmem [#allocation2], %s165
        // Predicated region
        $region33: #{tpu_custom_call.1} parent=31 // pred_check
          %p167 = pneg %p41
        $region34: #{tpu_custom_call.1} parent=31 // pred_check_branch
          %169 = sbr.rel (%p167) target = $region36
        $region35: #{tpu_custom_call.1} parent=31 // pred_region
          %170 = dma.done %s163, 1024
        $region36: #{tpu_custom_call.1} parent=31 // pred_fallthru
          _
        %s171 = sand.u32 %s28, 1
        %s172 = scalar_lea.sflag [#allocation3], %s171
        %s173 = sand.u32 %s28, 1
        %s174 = smul.addr %s173, 64
        %s175 = scalar_lea.vmem [#allocation2], %s174
        %p176 = pneg %p41
        %p177 = pneg %p38
        %p178 = pneg %p62
        %p179 = pneg %p59
        %p180 = pneg %p83
        %p181 = pneg %p80
        %p182 = pneg %p109
        %p183 = pneg %p106
        %s184 = sand.u32 %s96, 1
        %s185 = scalar_lea.sflag [#allocation4], %s184
        %s186 = sand.u32 %s96, 1
        %s187 = smul.addr %s186, 64
        %s188 = scalar_lea.vmem [#allocation5], %s187
        %v189 = vld [vmem:[%s166] sm:$0xff]
        %v190 = vld [vmem:[%s166 + $0x8] sm:$0xff]
        %v191 = vld [vmem:[%s166 + $0x10] sm:$0xff]
        %v192 = vld [vmem:[%s166 + $0x18] sm:$0xff]
        %v193 = vld [vmem:[%s166 + $0x20] sm:$0xff]
        %v194 = vld [vmem:[%s166 + $0x28] sm:$0xff]
        %v195 = vld [vmem:[%s166 + $0x30] sm:$0xff]
        %v196 = vld [vmem:[%s166 + $0x38] sm:$0xff]
        %v197 = vadd.f32 %v189, %v190
        %v198 = vadd.f32 %v197, %v191
        %v199 = vadd.f32 %v198, %v192
        %200 = vadd.xlane.f32.xlu0 %v199
        %v201 = vpop.xlane.xlu0 %200
        %v202 = vadd.f32 %v193, %v194
        %v203 = vadd.f32 %v202, %v195
        %v204 = vadd.f32 %v203, %v196
        %205 = vadd.xlane.f32.xlu0 %v204
        %v206 = vpop.xlane.xlu0 %205
        %v207 = vmax.f32 %v189, %v191
        %v208 = vmax.f32 %v190, %v192
        %v209 = vmax.f32 %v207, %v208
        %210 = vmax.xlane.f32.xlu0 %v209
        %v211 = vpop.xlane.xlu0 %210
        %v212 = vmax.f32 %v193, %v195
        %v213 = vmax.f32 %v194, %v196
        %v214 = vmax.f32 %v212, %v213
        %215 = vmax.xlane.f32.xlu0 %v214
        %v216 = vpop.xlane.xlu0 %215
        %v217 = vmul.f32 %v201, 0.001953125
        %v218 = vmul.f32 %v206, 0.001953125
        %v219 = vld [vmem:[%s1] sm:$0xff]
        %v220 = vld [vmem:[%s1 + $0x8] sm:$0xff]
        %v221 = vld [vmem:[%s2] sm:$0xff]
        %v222 = vld [vmem:[%s2 + $0x8] sm:$0xff]
        %v223 = vld [vmem:[%s2 + $0x10] sm:$0xff]
        %v224 = vld [vmem:[%s2 + $0x18] sm:$0xff]
        %v227 = vlaneseq
        %v228 = vand.u32 %v227, 127
        %v229 = vlaneseq
        %v230 = vshrl.u32 %v229, 7
        %v231 = vsub.s32 %v228, %v230
        %v232 = vrot.slane %v217, %v231
        %v233 = vadd.s32 %v228, 4294967288
        %v234 = vlaneseq
        %v235 = vshrl.u32 %v234, 7
        %v236 = vsub.s32 %v233, %v235
        %v237 = vrot.slane %v218, %v236
        %vm238 = vcmask 130112
        %v239 = vsel %vm238, %v237, %v232
        %v243 = vlaneseq
        %v244 = vshrl.u32 %v243, 7
        %v245 = vsub.s32 %v228, %v244
        %v246 = vrot.slane %v211, %v245
        %v247 = vlaneseq
        %v248 = vshrl.u32 %v247, 7
        %v249 = vsub.s32 %v233, %v248
        %v250 = vrot.slane %v216, %v249
        %v251 = vsel %vm238, %v250, %v246
        %vm253 = vcmask 1040384
        %v254 = vsel %vm253, %v239, %v251
        %vm255 = vcmask 130048
        %v257 = vsel %vm255, %v254, 0
        %259 = vmatprep.subr.mxu0 0.0
        %260 = vmatpush1.msra.mxu0 %v219
        %261 = vmatprep.subr.mxu0 0.0
        %262 = vmatpush1.msra.mxu0 %v220
        %263 = vmatprep.subr.mxu0 0.0
        %264 = vmatpush1.msra.mxu0 0.0
        %265 = vmatprep.subr.mxu0 0.0
        %266 = vmatpush1.msra.mxu0 0.0
        %267 = vmatprep.subr.mxu0 0.0
        %268 = vmatpush1.msra.mxu0 0.0
        %269 = vmatprep.subr.mxu0 0.0
        %270 = vmatpush1.msra.mxu0 0.0
        %271 = vmatprep.subr.mxu0 0.0
        %272 = vmatpush1.msra.mxu0 0.0
        %273 = vmatprep.subr.mxu0 0.0
        %274 = vmatpush1.msra.mxu0 0.0
        %275 = vmatprep.subr.mxu0 0.0
        %276 = vmatpush1.msra.mxu0 0.0
        %277 = vmatprep.subr.mxu0 0.0
        %278 = vmatpush1.msra.mxu0 0.0
        %279 = vmatprep.subr.mxu0 0.0
        %280 = vmatpush1.msra.mxu0 0.0
        %281 = vmatprep.subr.mxu0 0.0
        %282 = vmatpush1.msra.mxu0 0.0
        %283 = vmatprep.subr.mxu0 0.0
        %284 = vmatpush1.msra.mxu0 0.0
        %285 = vmatprep.subr.mxu0 0.0
        %286 = vmatpush1.msra.mxu0 0.0
        %287 = vmatprep.subr.mxu0 0.0
        %288 = vmatpush1.msra.mxu0 0.0
        %289 = vmatprep.subr.mxu0 0.0
        %290 = vmatpush1.msra.mxu0 0.0
        %291 = vmatprep.subr.mxu0 0.0
        %292 = vmatpush1.msra.mxu0 0.0
        %293 = vmatprep.subr.mxu0 0.0
        %294 = vmatpush1.msra.mxu0 0.0
        %295 = vmatprep.subr.mxu0 0.0
        %296 = vmatpush1.msra.mxu0 0.0
        %297 = vmatprep.subr.mxu0 0.0
        %298 = vmatpush1.msra.mxu0 0.0
        %299 = vmatprep.subr.mxu0 0.0
        %300 = vmatpush1.msra.mxu0 0.0
        %301 = vmatprep.subr.mxu0 0.0
        %302 = vmatpush1.msra.mxu0 0.0
        %303 = vmatprep.subr.mxu0 0.0
        %304 = vmatpush1.msra.mxu0 0.0
        %305 = vmatprep.subr.mxu0 0.0
        %306 = vmatpush1.msra.mxu0 0.0
        %307 = vmatprep.subr.mxu0 0.0
        %308 = vmatpush1.msra.mxu0 0.0
        %309 = vmatprep.subr.mxu0 0.0
        %310 = vmatpush1.msra.mxu0 0.0
        %311 = vmatprep.subr.mxu0 0.0
        %312 = vmatpush1.msra.mxu0 0.0
        %313 = vmatprep.subr.mxu0 0.0
        %314 = vmatpush1.msra.mxu0 0.0
        %315 = vmatprep.subr.mxu0 0.0
        %316 = vmatpush1.msra.mxu0 0.0
        %317 = vmatprep.subr.mxu0 0.0
        %318 = vmatpush1.msra.mxu0 0.0
        %319 = vmatprep.subr.mxu0 0.0
        %320 = vmatpush1.msra.mxu0 0.0
        %321 = vmatprep.subr.mxu0 0.0
        %322 = vmatpush1.msra.mxu0 0.0
        %323 = vmatprep.mubr.f32.mxu0 0.0
        %324 = vmatmul.mubr.f32.gmra.mrb[0].mxu0 %v257
        %v325 = vpop.f32.mrb[0].mxu0
        %v326 = vadd.f32 0.0, %v325
        %v327 = vpop.f32.mrb[0].mxu0
        %328 = vdwg.mxu0
        %v329 = vmax.f32 %v326, 0.0
        %vm330 = vcmask 261120
        %v332 = vsel %vm330, %v329, 0
        %334 = vmatprep.subr.mxu0 0.0
        %335 = vmatpush1.msra.mxu0 %v221
        %336 = vmatprep.subr.mxu0 0.0
        %337 = vmatpush1.msra.mxu0 %v222
        %338 = vmatprep.subr.mxu0 0.0
        %339 = vmatpush1.msra.mxu0 %v223
        %340 = vmatprep.subr.mxu0 0.0
        %341 = vmatpush1.msra.mxu0 %v224
        %342 = vmatprep.subr.mxu0 0.0
        %343 = vmatpush1.msra.mxu0 0.0
        %344 = vmatprep.subr.mxu0 0.0
        %345 = vmatpush1.msra.mxu0 0.0
        %346 = vmatprep.subr.mxu0 0.0
        %347 = vmatpush1.msra.mxu0 0.0
        %348 = vmatprep.subr.mxu0 0.0
        %349 = vmatpush1.msra.mxu0 0.0
        %350 = vmatprep.subr.mxu0 0.0
        %351 = vmatpush1.msra.mxu0 0.0
        %352 = vmatprep.subr.mxu0 0.0
        %353 = vmatpush1.msra.mxu0 0.0
        %354 = vmatprep.subr.mxu0 0.0
        %355 = vmatpush1.msra.mxu0 0.0
        %356 = vmatprep.subr.mxu0 0.0
        %357 = vmatpush1.msra.mxu0 0.0
        %358 = vmatprep.subr.mxu0 0.0
        %359 = vmatpush1.msra.mxu0 0.0
        %360 = vmatprep.subr.mxu0 0.0
        %361 = vmatpush1.msra.mxu0 0.0
        %362 = vmatprep.subr.mxu0 0.0
        %363 = vmatpush1.msra.mxu0 0.0
        %364 = vmatprep.subr.mxu0 0.0
        %365 = vmatpush1.msra.mxu0 0.0
        %366 = vmatprep.subr.mxu0 0.0
        %367 = vmatpush1.msra.mxu0 0.0
        %368 = vmatprep.subr.mxu0 0.0
        %369 = vmatpush1.msra.mxu0 0.0
        %370 = vmatprep.subr.mxu0 0.0
        %371 = vmatpush1.msra.mxu0 0.0
        %372 = vmatprep.subr.mxu0 0.0
        %373 = vmatpush1.msra.mxu0 0.0
        %374 = vmatprep.subr.mxu0 0.0
        %375 = vmatpush1.msra.mxu0 0.0
        %376 = vmatprep.subr.mxu0 0.0
        %377 = vmatpush1.msra.mxu0 0.0
        %378 = vmatprep.subr.mxu0 0.0
        %379 = vmatpush1.msra.mxu0 0.0
        %380 = vmatprep.subr.mxu0 0.0
        %381 = vmatpush1.msra.mxu0 0.0
        %382 = vmatprep.subr.mxu0 0.0
        %383 = vmatpush1.msra.mxu0 0.0
        %384 = vmatprep.subr.mxu0 0.0
        %385 = vmatpush1.msra.mxu0 0.0
        %386 = vmatprep.subr.mxu0 0.0
        %387 = vmatpush1.msra.mxu0 0.0
        %388 = vmatprep.subr.mxu0 0.0
        %389 = vmatpush1.msra.mxu0 0.0
        %390 = vmatprep.subr.mxu0 0.0
        %391 = vmatpush1.msra.mxu0 0.0
        %392 = vmatprep.subr.mxu0 0.0
        %393 = vmatpush1.msra.mxu0 0.0
        %394 = vmatprep.subr.mxu0 0.0
        %395 = vmatpush1.msra.mxu0 0.0
        %396 = vmatprep.subr.mxu0 0.0
        %397 = vmatpush1.msra.mxu0 0.0
        %398 = vmatprep.mubr.f32.mxu0 0.0
        %399 = vmatmul.mubr.f32.gmra.mrb[0].mxu0 %v332
        %v400 = vpop.f32.mrb[0].mxu0
        %v401 = vadd.f32 0.0, %v400
        %v402 = vpop.f32.mrb[0].mxu0
        %403 = vdwg.mxu0
        %v405 = vrot.slane %v401, 1
        %v407 = vadd.f32 %v401, %v405
        %v408 = vxor.u32 %v407, 2147483648
        %v409 = vmul.f32 %v408, 1.442695
        %v410 = vpow.pop %v409
        %v411 = vadd.f32 %v410, 1.0
        %v412 = vrcp.pop %v411
        %v413 = vmul.f32 1.0, %v412
        %v414 = vlaneseq
        %v415 = vshrl.u32 %v414, 7
        %v416 = vsub.s32 0, %v415
        %v417 = vrot.slane %v413, %v416
        %419 = vbcast.lane.b32.xlu0 %v417, 256
        %v420 = vpop.permute.xlu0 %419
        %s422 = sor.u32 256, 8
        %423 = vbcast.lane.b32.xlu0 %v417, %s422
        %v424 = vpop.permute.xlu0 %423
        %v425 = vmul.f32 %v189, %v420
        %v426 = vmul.f32 %v190, %v420
        %v427 = vmul.f32 %v191, %v420
        %v428 = vmul.f32 %v192, %v420
        %v429 = vmul.f32 %v193, %v424
        %v430 = vmul.f32 %v194, %v424
        %v431 = vmul.f32 %v195, %v424
        %v432 = vmul.f32 %v196, %v424
        %433 = vst [vmem:[%s188] sm:$0xff] %v425
        %434 = vst [vmem:[%s188 + $0x8] sm:$0xff] %v426
        %435 = vst [vmem:[%s188 + $0x10] sm:$0xff] %v427
        %436 = vst [vmem:[%s188 + $0x18] sm:$0xff] %v428
        %437 = vst [vmem:[%s188 + $0x20] sm:$0xff] %v429
        %438 = vst [vmem:[%s188 + $0x28] sm:$0xff] %v430
        %439 = vst [vmem:[%s188 + $0x30] sm:$0xff] %v431
        %440 = vst [vmem:[%s188 + $0x38] sm:$0xff] %v432
        %s441 = sand.u32 %s96, 1
        %s442 = scalar_lea.sflag [#allocation4], %s441
        %s443 = sand.u32 %s96, 1
        %s444 = smul.addr %s443, 64
        %s445 = scalar_lea.vmem [#allocation5], %s444
        // Predicated region
        $region37: #{tpu_custom_call.1} parent=31 // pred_check
          %p446 = pneg %p106
        $region38: #{tpu_custom_call.1} parent=31 // pred_check_branch
          %448 = sbr.rel (%p446) target = $region40
        $region39: #{tpu_custom_call.1} parent=31 // pred_region
          %s450 = ssub.s32 1024, 1024
          %451 = vsyncadd %s442, %s450
          %s452 = smul.addr %s20, 8
          %s453 = smul.addr %s452, 128
          %s454 = scalar_lea.hbm %s3, %s453
          %s455 = sshll.u32 %s445, 4
          %s456 = int_to_ptr.vmem [resolvable:$true] %s455
          %461 = dma.vmem_to_hbm [thread:$0]  %s456, 1024, %s454, %s442, 512, 512, 32
        $region40: #{tpu_custom_call.1} parent=31 // pred_fallthru
          _
      $region32: #{tpu_custom_call.1} parent=5 // pred_fallthru
        _
      %p462 = scmp.le.s32.totalorder 2, %s15
      // Predicated region
      $region41: #{tpu_custom_call.1} parent=5 // pred_check
        %p463 = pneg %p462
      $region42: #{tpu_custom_call.1} parent=5 // pred_check_branch
        %465 = sbr.rel (%p463) target = $region44
      $region43: #{tpu_custom_call.1} parent=5 // pred_region
        %s466 = ssub.s32 %s15, 2
        // Predicated region
        $region45: #{tpu_custom_call.1} parent=43 // pred_check
          %p467 = pneg %p112
        $region46: #{tpu_custom_call.1} parent=43 // pred_check_branch
          %469 = sbr.rel (%p467) target = $region48
        $region47: #{tpu_custom_call.1} parent=43 // pred_region
          %s470 = sand.u32 %s97, 1
          %s471 = scalar_lea.sflag [#allocation4], %s470
          %s472 = sand.u32 %s97, 1
          %s473 = smul.addr %s472, 64
          %s474 = scalar_lea.vmem [#allocation5], %s473
          %475 = dma.done %s471, 1024
        $region48: #{tpu_custom_call.1} parent=43 // pred_fallthru
          _
      $region44: #{tpu_custom_call.1} parent=5 // pred_fallthru
        _
    $region6: #{tpu_custom_call.1} parent=1 // loop_footer
      %s19 = sadd.s32 1, %s15
    $region7: #{tpu_custom_call.1} parent=1 // loop_footer_branch
      %14 = sbr.rel target = $region3
    $region8: #{tpu_custom_call.1} parent=1 // loop_exit
      _
    %476 = vsyncpa [#allocation3], 1
    %s477 = scalar_lea.sflag [#allocation3], 1
    %478 = vsyncpa %s477, 1
    %479 = vsyncpa [#allocation4], 1
    %s480 = scalar_lea.sflag [#allocation4], 1
    %481 = vsyncpa %s480, 1

</llo_original>
